<compile_context>
chip_gen: v5e
topology: v5e:2x2
jax: 0.10.0
libtpu: 0.0.40
codegen_flags: <defaults>
</compile_context>

<pallas_src>
import jax
import jax.numpy as jnp
from jax.experimental import pallas as pl
from jax.experimental.pallas import tpu as pltpu

# Problem sizes (small, consistent with an NCHW image-generator input).
B, C_IN, H, W = 2, 4, 16, 16
C_HID = 8
C_OUT = 4
K = 3                      # 3x3 conv, stride 1, SAME padding
HW = H * W                 # 256 pixels per image
BHW = B * HW               # 512 lanes: batch folded into the lane axis
LOG2_W = W.bit_length() - 1  # 4 (W is a power of two)


# ----------------------------------------------------------------------------
# Pallas kernel: conv3x3(C_IN->C_HID) + ReLU + conv3x3(C_HID->C_OUT), single
# grid step, channels on sublanes / (batch*pixels) on lanes, one im2col matmul
# per conv.
# ----------------------------------------------------------------------------
def _gen_kernel(x_ref, w1_ref, b1_ref, w2_ref, b2_ref, o_ref,
                x_lanes, taps1, taps2):
    # ---- pack batch into the lane axis: (B, C_IN, HW) -> (C_IN, B*HW) ------
    # 256-aligned lane offsets -> full-vreg stores, no relayout.
    for b in range(B):
        x_lanes[:, b * HW:(b + 1) * HW] = x_ref[b].astype(jnp.float32)
    x = x_lanes[...]                                        # (C_IN, BHW)

    # ---- per-image boundary masks (built once per call; W=H=2^k bit ops) ---
    flat = jax.lax.broadcasted_iota(jnp.int32, (1, BHW), 1)
    col = flat & (W - 1)                                    # column within image
    row = (flat >> LOG2_W) & (H - 1)                        # row within image
    masks = {}
    for dy in (-1, 0, 1):
        for dx in (-1, 0, 1):
            m = None
            if dy == -1:
                m = row >= 1
            elif dy == 1:
                m = row <= H - 2
            if dx == -1:
                m = (col >= 1) if m is None else (m & (col >= 1))
            elif dx == 1:
                m = (col <= W - 2) if m is None else (m & (col <= W - 2))
            masks[(dy, dx)] = m                             # None for center tap

    def conv3x3(inp, w_packed, taps_ref, c_in):
        # inp: (c_in, BHW) f32; w_packed: (c_out, K*K*c_in) f32.
        # Build the stacked im2col operand in VMEM scratch, then one matmul.
        for ky in range(K):
            for kx in range(K):
                dy, dx = ky - 1, kx - 1
                off = dy * W + dx                           # static flat shift
                t = ky * K + kx
                tap = inp if off == 0 else pltpu.roll(inp, shift=(-off) % BHW,
                                                      axis=1)
                m = masks[(dy, dx)]
                if m is not None:
                    # Zeroes SAME-padding taps AND any roll wrap across the
                    # image / batch boundary (mask is per-image position).
                    tap = jnp.where(m, tap, 0.0)
                taps_ref[t * c_in:(t + 1) * c_in, :] = tap
        return jnp.dot(w_packed, taps_ref[...],
                       preferred_element_type=jnp.float32)  # (c_out, BHW)

    w1 = w1_ref[...]                                        # (C_HID, K*K*C_IN)
    w2 = w2_ref[...]                                        # (C_OUT, K*K*C_HID)
    h = jnp.maximum(conv3x3(x, w1, taps1, C_IN) + b1_ref[...], 0.0)
    out = conv3x3(h, w2, taps2, C_HID) + b2_ref[...]        # (C_OUT, BHW)

    # ---- unpack lanes back to per-batch blocks (256-aligned lane slices) ---
    for b in range(B):
        o_ref[b] = out[:, b * HW:(b + 1) * HW].astype(o_ref.dtype)


def pallas_generator_forward(x_nchw, params):
    """x_nchw: (B, C_IN, H, W) float32 -> (B, C_OUT, H, W) float32."""
    w1_p, b1_t, w2_p, b2_t = params                         # pre-packed params
    x_flat = x_nchw.reshape(B, C_IN, HW)                    # metadata-only

    vmem_spec = lambda: pl.BlockSpec(memory_space=pltpu.MemorySpace.VMEM)
    out_flat = pl.pallas_call(
        _gen_kernel,
        out_shape=jax.ShapeDtypeStruct((B, C_OUT, HW), x_nchw.dtype),
        in_specs=[vmem_spec(), vmem_spec(), vmem_spec(), vmem_spec(), vmem_spec()],
        out_specs=vmem_spec(),
        scratch_shapes=[
            pltpu.VMEM((C_IN, BHW), jnp.float32),            # batch-folded input
            pltpu.VMEM((K * K * C_IN, BHW), jnp.float32),    # conv1 im2col taps
            pltpu.VMEM((K * K * C_HID, BHW), jnp.float32),   # conv2 im2col taps
        ],
    )(x_flat, w1_p, b1_t, w2_p, b2_t)
    return out_flat.reshape(B, C_OUT, H, W)                 # metadata-only


# ----------------------------------------------------------------------------
# Synthetic generator (deterministic init) exposed like env['generators'][name]
# ----------------------------------------------------------------------------
class PallasConvGenerator:
    def __init__(self, key):
        k1, k2, k3, k4 = jax.random.split(key, 4)
        # HWIO weights (used for the lax reference check).
        self.w1 = jax.random.normal(k1, (K, K, C_IN, C_HID), jnp.float32) * 0.1
        self.b1 = jax.random.normal(k2, (1, C_HID), jnp.float32) * 0.01
        self.w2 = jax.random.normal(k3, (K, K, C_HID, C_OUT), jnp.float32) * 0.1
        self.b2 = jax.random.normal(k4, (1, C_OUT), jnp.float32) * 0.01
        # Kernel layout: single dense 2D matrices (C_out, K*K*C_in) ordered to
        # match the tap stacking (t = ky*K + kx, rows t*C_in + c_in), and
        # column biases (C, 1).  Packed once; no per-call XLA transposes.
        self.w1_p = jnp.transpose(self.w1, (3, 0, 1, 2)).reshape(C_HID, K * K * C_IN)
        self.b1_t = self.b1.reshape(C_HID, 1)
        self.w2_p = jnp.transpose(self.w2, (3, 0, 1, 2)).reshape(C_OUT, K * K * C_HID)
        self.b2_t = self.b2.reshape(C_OUT, 1)
        self.training = True

    def __call__(self, x):
        return pallas_generator_forward(
            x, (self.w1_p, self.b1_t, self.w2_p, self.b2_t))


# ----------------------------------------------------------------------------
# GeneratorInjector semantics (glue), mirroring the PyTorch module.
# ----------------------------------------------------------------------------
def cfg_get(cfg, keys, default):
    v = cfg
    for k in keys:
        if isinstance(v, dict) and k in v:
            v = v[k]
        else:
            return default
    return v


def extract_params_from_state(params, state, root=True):
    if isinstance(params, (list, tuple)):
        p = [extract_params_from_state(r, state, False) for r in params]
    elif isinstance(params, str):
        p = None if params == 'None' else state[params]
    else:
        p = params
    if root and not isinstance(p, list):
        p = [p]
    return p


class Injector:
    def __init__(self, cfg, env):
        self.cfg = cfg
        self.env = env
        if 'in' in cfg:
            self.input = cfg['in']
        if 'out' in cfg:
            self.output = cfg['out']


class GeneratorInjector(Injector):
    def __init__(self, cfg, env):
        super().__init__(cfg, env)
        self.grad = cfg['grad'] if 'grad' in cfg else True
        self.method = cfg_get(cfg, ['method'], None)
        self.args = cfg_get(cfg, ['args'], {})
        self.fp16_override = cfg_get(cfg, ['fp16'], True)

    def forward(self, state):
        gen = self.env['generators'][self.cfg['generator']]
        if self.method is not None and hasattr(gen, 'module'):
            gen = gen.module
        method = gen if self.method is None else getattr(gen, self.method)
        # TODO(synk): torch.cuda.amp.autocast has no direct Pallas equivalent;
        # the kernel accumulates in fp32 (env fp16=False here).
        if isinstance(self.input, list):
            params = extract_params_from_state(self.input, state)
        else:
            params = [state[self.input]]
        if self.grad:
            results = method(*params, **self.args)
        else:
            # no_grad / eval-mode equivalent: stop gradients (no BN/dropout here).
            results = jax.lax.stop_gradient(method(*params, **self.args))
        new_state = {}
        if isinstance(self.output, list):
            assert isinstance(results, (list, tuple))
            for i, k in enumerate(self.output):
                new_state[k] = results[i]
        else:
            new_state[self.output] = results
        return new_state


if __name__ == "__main__":
    key = jax.random.PRNGKey(0)
    kx, kg = jax.random.split(key)
    x = jax.random.normal(kx, (B, C_IN, H, W), jnp.float32)  # NCHW, like PyTorch

    gen = PallasConvGenerator(kg)
    env = {'generators': {'net_g': gen}, 'cfg': {'fp16': False}}
    cfg = {'in': 'lq', 'out': 'gen_out', 'generator': 'net_g', 'grad': True}

    injector = GeneratorInjector(cfg, env)
    new_state = injector.forward({'lq': x})
    out = jax.block_until_ready(new_state['gen_out'])
    assert out.shape == (B, C_OUT, H, W)

    # Reference check with lax conv (SAME padding, NHWC/HWIO).
    xh = jnp.transpose(x, (0, 2, 3, 1))
    h_ref = jax.lax.conv_general_dilated(
        xh, gen.w1, (1, 1), 'SAME',
        dimension_numbers=('NHWC', 'HWIO', 'NHWC'),
        precision=jax.lax.Precision.HIGHEST) + gen.b1[0]
    h_ref = jnp.maximum(h_ref, 0.0)
    ref = jax.lax.conv_general_dilated(
        h_ref, gen.w2, (1, 1), 'SAME',
        dimension_numbers=('NHWC', 'HWIO', 'NHWC'),
        precision=jax.lax.Precision.HIGHEST) + gen.b2[0]
    ref = jnp.transpose(ref, (0, 3, 1, 2))
    err = float(jnp.max(jnp.abs(out - ref)))
    assert err < 2e-3, f"mismatch vs reference conv: max abs err {err}"

    print("KERNEL_OK")
</pallas_src>

<mosaic_0001>
module attributes {stable_mosaic.version = 11 : i64} {
  func.func @_gen_kernel(%arg0: memref<2x4x256xf32, #tpu.memory_space<vmem>>, %arg1: memref<8x36xf32, #tpu.memory_space<vmem>>, %arg2: memref<8x1xf32, #tpu.memory_space<vmem>>, %arg3: memref<4x72xf32, #tpu.memory_space<vmem>>, %arg4: memref<4x1xf32, #tpu.memory_space<vmem>>, %arg5: memref<2x4x256xf32, #tpu.memory_space<vmem>>, %arg6: memref<4x512xf32, #tpu.memory_space<vmem>>, %arg7: memref<36x512xf32, #tpu.memory_space<vmem>>, %arg8: memref<72x512xf32, #tpu.memory_space<vmem>>) attributes {dimension_semantics = [], scalar_prefetch = 0 : i64, scratch_operands = 3 : i64, tpu.core_type = #tpu.core_type<tc>} {
    %c0 = arith.constant 0 : index
    %c0_0 = arith.constant 0 : index
    %c0_1 = arith.constant 0 : index
    %0 = vector.load %arg0[%c0, %c0_0, %c0_1] : memref<2x4x256xf32, #tpu.memory_space<vmem>>, vector<1x4x256xf32>
    %1 = vector.shape_cast %0 : vector<1x4x256xf32> to vector<4x256xf32>
    %c0_2 = arith.constant 0 : index
    %c0_3 = arith.constant 0 : index
    %2 = vector.load %arg6[%c0_2, %c0_3] : memref<4x512xf32, #tpu.memory_space<vmem>>, vector<4x256xf32>
    tpu.vector_store %arg6[%c0_2, %c0_3], %1 {strides = array<i32>} : memref<4x512xf32, #tpu.memory_space<vmem>>, vector<4x256xf32>,
    %c1 = arith.constant 1 : index
    %c0_4 = arith.constant 0 : index
    %c0_5 = arith.constant 0 : index
    %3 = vector.load %arg0[%c1, %c0_4, %c0_5] : memref<2x4x256xf32, #tpu.memory_space<vmem>>, vector<1x4x256xf32>
    %4 = vector.shape_cast %3 : vector<1x4x256xf32> to vector<4x256xf32>
    %c0_6 = arith.constant 0 : index
    %c256 = arith.constant 256 : index
    %5 = vector.load %arg6[%c0_6, %c256] : memref<4x512xf32, #tpu.memory_space<vmem>>, vector<4x256xf32>
    tpu.vector_store %arg6[%c0_6, %c256], %4 {strides = array<i32>} : memref<4x512xf32, #tpu.memory_space<vmem>>, vector<4x256xf32>,
    %c0_7 = arith.constant 0 : index
    %c0_8 = arith.constant 0 : index
    %6 = vector.load %arg6[%c0_7, %c0_8] : memref<4x512xf32, #tpu.memory_space<vmem>>, vector<4x512xf32>
    %7 = tpu.iota {dimensions = array<i32: 1>} : vector<1x512xi32>
    %c15_i32 = arith.constant 15 : i32
    %8 = vector.broadcast %c15_i32 : i32 to vector<1x512xi32>
    %9 = arith.andi %7, %8 : vector<1x512xi32>
    %c4_i32 = arith.constant 4 : i32
    %10 = vector.broadcast %c4_i32 : i32 to vector<1x512xi32>
    %11 = arith.shrsi %7, %10 : vector<1x512xi32>
    %c15_i32_9 = arith.constant 15 : i32
    %12 = vector.broadcast %c15_i32_9 : i32 to vector<1x512xi32>
    %13 = arith.andi %11, %12 : vector<1x512xi32>
    %c1_i32 = arith.constant 1 : i32
    %14 = vector.broadcast %c1_i32 : i32 to vector<1x512xi32>
    %15 = arith.cmpi sge, %13, %14 : vector<1x512xi32>
    %c1_i32_10 = arith.constant 1 : i32
    %16 = vector.broadcast %c1_i32_10 : i32 to vector<1x512xi32>
    %17 = arith.cmpi sge, %9, %16 : vector<1x512xi32>
    %18 = arith.andi %15, %17 : vector<1x512xi1>
    %c1_i32_11 = arith.constant 1 : i32
    %19 = vector.broadcast %c1_i32_11 : i32 to vector<1x512xi32>
    %20 = arith.cmpi sge, %13, %19 : vector<1x512xi32>
    %c1_i32_12 = arith.constant 1 : i32
    %21 = vector.broadcast %c1_i32_12 : i32 to vector<1x512xi32>
    %22 = arith.cmpi sge, %13, %21 : vector<1x512xi32>
    %c14_i32 = arith.constant 14 : i32
    %23 = vector.broadcast %c14_i32 : i32 to vector<1x512xi32>
    %24 = arith.cmpi sle, %9, %23 : vector<1x512xi32>
    %25 = arith.andi %22, %24 : vector<1x512xi1>
    %c1_i32_13 = arith.constant 1 : i32
    %26 = vector.broadcast %c1_i32_13 : i32 to vector<1x512xi32>
    %27 = arith.cmpi sge, %9, %26 : vector<1x512xi32>
    %c14_i32_14 = arith.constant 14 : i32
    %28 = vector.broadcast %c14_i32_14 : i32 to vector<1x512xi32>
    %29 = arith.cmpi sle, %9, %28 : vector<1x512xi32>
    %c14_i32_15 = arith.constant 14 : i32
    %30 = vector.broadcast %c14_i32_15 : i32 to vector<1x512xi32>
    %31 = arith.cmpi sle, %13, %30 : vector<1x512xi32>
    %c1_i32_16 = arith.constant 1 : i32
    %32 = vector.broadcast %c1_i32_16 : i32 to vector<1x512xi32>
    %33 = arith.cmpi sge, %9, %32 : vector<1x512xi32>
    %34 = arith.andi %31, %33 : vector<1x512xi1>
    %c14_i32_17 = arith.constant 14 : i32
    %35 = vector.broadcast %c14_i32_17 : i32 to vector<1x512xi32>
    %36 = arith.cmpi sle, %13, %35 : vector<1x512xi32>
    %c14_i32_18 = arith.constant 14 : i32
    %37 = vector.broadcast %c14_i32_18 : i32 to vector<1x512xi32>
    %38 = arith.cmpi sle, %13, %37 : vector<1x512xi32>
    %c14_i32_19 = arith.constant 14 : i32
    %39 = vector.broadcast %c14_i32_19 : i32 to vector<1x512xi32>
    %40 = arith.cmpi sle, %9, %39 : vector<1x512xi32>
    %41 = arith.andi %38, %40 : vector<1x512xi1>
    %c0_20 = arith.constant 0 : index
    %c0_21 = arith.constant 0 : index
    %42 = vector.load %arg1[%c0_20, %c0_21] : memref<8x36xf32, #tpu.memory_space<vmem>>, vector<8x36xf32>
    %c0_22 = arith.constant 0 : index
    %c0_23 = arith.constant 0 : index
    %43 = vector.load %arg3[%c0_22, %c0_23] : memref<4x72xf32, #tpu.memory_space<vmem>>, vector<4x72xf32>
    %c17_i32 = arith.constant 17 : i32
    %44 = tpu.dynamic_rotate %6 by %c17_i32 dim 1 : vector<4x512xf32>, i32 -> vector<4x512xf32>
    %cst = arith.constant 0.000000e+00 : f32
    %45 = vector.shape_cast %18 : vector<1x512xi1> to vector<1x512xi1>
    %46 = vector.broadcast %45 : vector<1x512xi1> to vector<4x512xi1>
    %47 = vector.broadcast %cst : f32 to vector<4x512xf32>
    %48 = arith.select %46, %44, %47 : vector<4x512xi1>, vector<4x512xf32>
    %c0_24 = arith.constant 0 : index
    %c0_25 = arith.constant 0 : index
    %49 = vector.load %arg7[%c0_24, %c0_25] : memref<36x512xf32, #tpu.memory_space<vmem>>, vector<4x512xf32>
    tpu.vector_store %arg7[%c0_24, %c0_25], %48 {strides = array<i32>} : memref<36x512xf32, #tpu.memory_space<vmem>>, vector<4x512xf32>,
    %c16_i32 = arith.constant 16 : i32
    %50 = tpu.dynamic_rotate %6 by %c16_i32 dim 1 : vector<4x512xf32>, i32 -> vector<4x512xf32>
    %cst_26 = arith.constant 0.000000e+00 : f32
    %51 = vector.shape_cast %20 : vector<1x512xi1> to vector<1x512xi1>
    %52 = vector.broadcast %51 : vector<1x512xi1> to vector<4x512xi1>
    %53 = vector.broadcast %cst_26 : f32 to vector<4x512xf32>
    %54 = arith.select %52, %50, %53 : vector<4x512xi1>, vector<4x512xf32>
    %c4 = arith.constant 4 : index
    %c0_27 = arith.constant 0 : index
    %55 = vector.load %arg7[%c4, %c0_27] : memref<36x512xf32, #tpu.memory_space<vmem>>, vector<4x512xf32>
    tpu.vector_store %arg7[%c4, %c0_27], %54 {strides = array<i32>} : memref<36x512xf32, #tpu.memory_space<vmem>>, vector<4x512xf32>,
    %c15_i32_28 = arith.constant 15 : i32
    %56 = tpu.dynamic_rotate %6 by %c15_i32_28 dim 1 : vector<4x512xf32>, i32 -> vector<4x512xf32>
    %cst_29 = arith.constant 0.000000e+00 : f32
    %57 = vector.shape_cast %25 : vector<1x512xi1> to vector<1x512xi1>
    %58 = vector.broadcast %57 : vector<1x512xi1> to vector<4x512xi1>
    %59 = vector.broadcast %cst_29 : f32 to vector<4x512xf32>
    %60 = arith.select %58, %56, %59 : vector<4x512xi1>, vector<4x512xf32>
    %c8 = arith.constant 8 : index
    %c0_30 = arith.constant 0 : index
    %61 = vector.load %arg7[%c8, %c0_30] : memref<36x512xf32, #tpu.memory_space<vmem>>, vector<4x512xf32>
    tpu.vector_store %arg7[%c8, %c0_30], %60 {strides = array<i32>} : memref<36x512xf32, #tpu.memory_space<vmem>>, vector<4x512xf32>,
    %c1_i32_31 = arith.constant 1 : i32
    %62 = tpu.dynamic_rotate %6 by %c1_i32_31 dim 1 : vector<4x512xf32>, i32 -> vector<4x512xf32>
    %cst_32 = arith.constant 0.000000e+00 : f32
    %63 = vector.shape_cast %27 : vector<1x512xi1> to vector<1x512xi1>
    %64 = vector.broadcast %63 : vector<1x512xi1> to vector<4x512xi1>
    %65 = vector.broadcast %cst_32 : f32 to vector<4x512xf32>
    %66 = arith.select %64, %62, %65 : vector<4x512xi1>, vector<4x512xf32>
    %c12 = arith.constant 12 : index
    %c0_33 = arith.constant 0 : index
    %67 = vector.load %arg7[%c12, %c0_33] : memref<36x512xf32, #tpu.memory_space<vmem>>, vector<4x512xf32>
    tpu.vector_store %arg7[%c12, %c0_33], %66 {strides = array<i32>} : memref<36x512xf32, #tpu.memory_space<vmem>>, vector<4x512xf32>,
    %c16 = arith.constant 16 : index
    %c0_34 = arith.constant 0 : index
    %68 = vector.load %arg7[%c16, %c0_34] : memref<36x512xf32, #tpu.memory_space<vmem>>, vector<4x512xf32>
    tpu.vector_store %arg7[%c16, %c0_34], %6 {strides = array<i32>} : memref<36x512xf32, #tpu.memory_space<vmem>>, vector<4x512xf32>,
    %c511_i32 = arith.constant 511 : i32
    %69 = tpu.dynamic_rotate %6 by %c511_i32 dim 1 : vector<4x512xf32>, i32 -> vector<4x512xf32>
    %cst_35 = arith.constant 0.000000e+00 : f32
    %70 = vector.shape_cast %29 : vector<1x512xi1> to vector<1x512xi1>
    %71 = vector.broadcast %70 : vector<1x512xi1> to vector<4x512xi1>
    %72 = vector.broadcast %cst_35 : f32 to vector<4x512xf32>
    %73 = arith.select %71, %69, %72 : vector<4x512xi1>, vector<4x512xf32>
    %c20 = arith.constant 20 : index
    %c0_36 = arith.constant 0 : index
    %74 = vector.load %arg7[%c20, %c0_36] : memref<36x512xf32, #tpu.memory_space<vmem>>, vector<4x512xf32>
    tpu.vector_store %arg7[%c20, %c0_36], %73 {strides = array<i32>} : memref<36x512xf32, #tpu.memory_space<vmem>>, vector<4x512xf32>,
    %c497_i32 = arith.constant 497 : i32
    %75 = tpu.dynamic_rotate %6 by %c497_i32 dim 1 : vector<4x512xf32>, i32 -> vector<4x512xf32>
    %cst_37 = arith.constant 0.000000e+00 : f32
    %76 = vector.shape_cast %34 : vector<1x512xi1> to vector<1x512xi1>
    %77 = vector.broadcast %76 : vector<1x512xi1> to vector<4x512xi1>
    %78 = vector.broadcast %cst_37 : f32 to vector<4x512xf32>
    %79 = arith.select %77, %75, %78 : vector<4x512xi1>, vector<4x512xf32>
    %c24 = arith.constant 24 : index
    %c0_38 = arith.constant 0 : index
    %80 = vector.load %arg7[%c24, %c0_38] : memref<36x512xf32, #tpu.memory_space<vmem>>, vector<4x512xf32>
    tpu.vector_store %arg7[%c24, %c0_38], %79 {strides = array<i32>} : memref<36x512xf32, #tpu.memory_space<vmem>>, vector<4x512xf32>,
    %c496_i32 = arith.constant 496 : i32
    %81 = tpu.dynamic_rotate %6 by %c496_i32 dim 1 : vector<4x512xf32>, i32 -> vector<4x512xf32>
    %cst_39 = arith.constant 0.000000e+00 : f32
    %82 = vector.shape_cast %36 : vector<1x512xi1> to vector<1x512xi1>
    %83 = vector.broadcast %82 : vector<1x512xi1> to vector<4x512xi1>
    %84 = vector.broadcast %cst_39 : f32 to vector<4x512xf32>
    %85 = arith.select %83, %81, %84 : vector<4x512xi1>, vector<4x512xf32>
    %c28 = arith.constant 28 : index
    %c0_40 = arith.constant 0 : index
    %86 = vector.load %arg7[%c28, %c0_40] : memref<36x512xf32, #tpu.memory_space<vmem>>, vector<4x512xf32>
    tpu.vector_store %arg7[%c28, %c0_40], %85 {strides = array<i32>} : memref<36x512xf32, #tpu.memory_space<vmem>>, vector<4x512xf32>,
    %c495_i32 = arith.constant 495 : i32
    %87 = tpu.dynamic_rotate %6 by %c495_i32 dim 1 : vector<4x512xf32>, i32 -> vector<4x512xf32>
    %cst_41 = arith.constant 0.000000e+00 : f32
    %88 = vector.shape_cast %41 : vector<1x512xi1> to vector<1x512xi1>
    %89 = vector.broadcast %88 : vector<1x512xi1> to vector<4x512xi1>
    %90 = vector.broadcast %cst_41 : f32 to vector<4x512xf32>
    %91 = arith.select %89, %87, %90 : vector<4x512xi1>, vector<4x512xf32>
    %c32 = arith.constant 32 : index
    %c0_42 = arith.constant 0 : index
    %92 = vector.load %arg7[%c32, %c0_42] : memref<36x512xf32, #tpu.memory_space<vmem>>, vector<4x512xf32>
    tpu.vector_store %arg7[%c32, %c0_42], %91 {strides = array<i32>} : memref<36x512xf32, #tpu.memory_space<vmem>>, vector<4x512xf32>,
    %c0_43 = arith.constant 0 : index
    %c0_44 = arith.constant 0 : index
    %93 = vector.load %arg7[%c0_43, %c0_44] : memref<36x512xf32, #tpu.memory_space<vmem>>, vector<36x512xf32>
    %cst_45 = arith.constant dense<0.000000e+00> : vector<8x512xf32>
    %94 = tpu.matmul %42, %93, %cst_45 {dimension_numbers = #tpu.dot_dimension_numbers<[1], [0], [0], [1], [0, 0, 1, 1], [], []>} : vector<8x36xf32>, vector<36x512xf32>, vector<8x512xf32> -> vector<8x512xf32>
    %c0_46 = arith.constant 0 : index
    %c0_47 = arith.constant 0 : index
    %95 = vector.load %arg2[%c0_46, %c0_47] : memref<8x1xf32, #tpu.memory_space<vmem>>, vector<8x1xf32>
    %96 = vector.broadcast %95 : vector<8x1xf32> to vector<8x512xf32>
    %97 = arith.addf %94, %96 : vector<8x512xf32>
    %cst_48 = arith.constant 0.000000e+00 : f32
    %98 = vector.broadcast %cst_48 : f32 to vector<8x512xf32>
    %99 = arith.maximumf %97, %98 : vector<8x512xf32>
    %c17_i32_49 = arith.constant 17 : i32
    %100 = tpu.dynamic_rotate %99 by %c17_i32_49 dim 1 : vector<8x512xf32>, i32 -> vector<8x512xf32>
    %cst_50 = arith.constant 0.000000e+00 : f32
    %101 = vector.shape_cast %18 : vector<1x512xi1> to vector<1x512xi1>
    %102 = vector.broadcast %101 : vector<1x512xi1> to vector<8x512xi1>
    %103 = vector.broadcast %cst_50 : f32 to vector<8x512xf32>
    %104 = arith.select %102, %100, %103 : vector<8x512xi1>, vector<8x512xf32>
    %c0_51 = arith.constant 0 : index
    %c0_52 = arith.constant 0 : index
    %105 = vector.load %arg8[%c0_51, %c0_52] : memref<72x512xf32, #tpu.memory_space<vmem>>, vector<8x512xf32>
    tpu.vector_store %arg8[%c0_51, %c0_52], %104 {strides = array<i32>} : memref<72x512xf32, #tpu.memory_space<vmem>>, vector<8x512xf32>,
    %c16_i32_53 = arith.constant 16 : i32
    %106 = tpu.dynamic_rotate %99 by %c16_i32_53 dim 1 : vector<8x512xf32>, i32 -> vector<8x512xf32>
    %cst_54 = arith.constant 0.000000e+00 : f32
    %107 = vector.shape_cast %20 : vector<1x512xi1> to vector<1x512xi1>
    %108 = vector.broadcast %107 : vector<1x512xi1> to vector<8x512xi1>
    %109 = vector.broadcast %cst_54 : f32 to vector<8x512xf32>
    %110 = arith.select %108, %106, %109 : vector<8x512xi1>, vector<8x512xf32>
    %c8_55 = arith.constant 8 : index
    %c0_56 = arith.constant 0 : index
    %111 = vector.load %arg8[%c8_55, %c0_56] : memref<72x512xf32, #tpu.memory_space<vmem>>, vector<8x512xf32>
    tpu.vector_store %arg8[%c8_55, %c0_56], %110 {strides = array<i32>} : memref<72x512xf32, #tpu.memory_space<vmem>>, vector<8x512xf32>,
    %c15_i32_57 = arith.constant 15 : i32
    %112 = tpu.dynamic_rotate %99 by %c15_i32_57 dim 1 : vector<8x512xf32>, i32 -> vector<8x512xf32>
    %cst_58 = arith.constant 0.000000e+00 : f32
    %113 = vector.shape_cast %25 : vector<1x512xi1> to vector<1x512xi1>
    %114 = vector.broadcast %113 : vector<1x512xi1> to vector<8x512xi1>
    %115 = vector.broadcast %cst_58 : f32 to vector<8x512xf32>
    %116 = arith.select %114, %112, %115 : vector<8x512xi1>, vector<8x512xf32>
    %c16_59 = arith.constant 16 : index
    %c0_60 = arith.constant 0 : index
    %117 = vector.load %arg8[%c16_59, %c0_60] : memref<72x512xf32, #tpu.memory_space<vmem>>, vector<8x512xf32>
    tpu.vector_store %arg8[%c16_59, %c0_60], %116 {strides = array<i32>} : memref<72x512xf32, #tpu.memory_space<vmem>>, vector<8x512xf32>,
    %c1_i32_61 = arith.constant 1 : i32
    %118 = tpu.dynamic_rotate %99 by %c1_i32_61 dim 1 : vector<8x512xf32>, i32 -> vector<8x512xf32>
    %cst_62 = arith.constant 0.000000e+00 : f32
    %119 = vector.shape_cast %27 : vector<1x512xi1> to vector<1x512xi1>
    %120 = vector.broadcast %119 : vector<1x512xi1> to vector<8x512xi1>
    %121 = vector.broadcast %cst_62 : f32 to vector<8x512xf32>
    %122 = arith.select %120, %118, %121 : vector<8x512xi1>, vector<8x512xf32>
    %c24_63 = arith.constant 24 : index
    %c0_64 = arith.constant 0 : index
    %123 = vector.load %arg8[%c24_63, %c0_64] : memref<72x512xf32, #tpu.memory_space<vmem>>, vector<8x512xf32>
    tpu.vector_store %arg8[%c24_63, %c0_64], %122 {strides = array<i32>} : memref<72x512xf32, #tpu.memory_space<vmem>>, vector<8x512xf32>,
    %c32_65 = arith.constant 32 : index
    %c0_66 = arith.constant 0 : index
    %124 = vector.load %arg8[%c32_65, %c0_66] : memref<72x512xf32, #tpu.memory_space<vmem>>, vector<8x512xf32>
    tpu.vector_store %arg8[%c32_65, %c0_66], %99 {strides = array<i32>} : memref<72x512xf32, #tpu.memory_space<vmem>>, vector<8x512xf32>,
    %c511_i32_67 = arith.constant 511 : i32
    %125 = tpu.dynamic_rotate %99 by %c511_i32_67 dim 1 : vector<8x512xf32>, i32 -> vector<8x512xf32>
    %cst_68 = arith.constant 0.000000e+00 : f32
    %126 = vector.shape_cast %29 : vector<1x512xi1> to vector<1x512xi1>
    %127 = vector.broadcast %126 : vector<1x512xi1> to vector<8x512xi1>
    %128 = vector.broadcast %cst_68 : f32 to vector<8x512xf32>
    %129 = arith.select %127, %125, %128 : vector<8x512xi1>, vector<8x512xf32>
    %c40 = arith.constant 40 : index
    %c0_69 = arith.constant 0 : index
    %130 = vector.load %arg8[%c40, %c0_69] : memref<72x512xf32, #tpu.memory_space<vmem>>, vector<8x512xf32>
    tpu.vector_store %arg8[%c40, %c0_69], %129 {strides = array<i32>} : memref<72x512xf32, #tpu.memory_space<vmem>>, vector<8x512xf32>,
    %c497_i32_70 = arith.constant 497 : i32
    %131 = tpu.dynamic_rotate %99 by %c497_i32_70 dim 1 : vector<8x512xf32>, i32 -> vector<8x512xf32>
    %cst_71 = arith.constant 0.000000e+00 : f32
    %132 = vector.shape_cast %34 : vector<1x512xi1> to vector<1x512xi1>
    %133 = vector.broadcast %132 : vector<1x512xi1> to vector<8x512xi1>
    %134 = vector.broadcast %cst_71 : f32 to vector<8x512xf32>
    %135 = arith.select %133, %131, %134 : vector<8x512xi1>, vector<8x512xf32>
    %c48 = arith.constant 48 : index
    %c0_72 = arith.constant 0 : index
    %136 = vector.load %arg8[%c48, %c0_72] : memref<72x512xf32, #tpu.memory_space<vmem>>, vector<8x512xf32>
    tpu.vector_store %arg8[%c48, %c0_72], %135 {strides = array<i32>} : memref<72x512xf32, #tpu.memory_space<vmem>>, vector<8x512xf32>,
    %c496_i32_73 = arith.constant 496 : i32
    %137 = tpu.dynamic_rotate %99 by %c496_i32_73 dim 1 : vector<8x512xf32>, i32 -> vector<8x512xf32>
    %cst_74 = arith.constant 0.000000e+00 : f32
    %138 = vector.shape_cast %36 : vector<1x512xi1> to vector<1x512xi1>
    %139 = vector.broadcast %138 : vector<1x512xi1> to vector<8x512xi1>
    %140 = vector.broadcast %cst_74 : f32 to vector<8x512xf32>
    %141 = arith.select %139, %137, %140 : vector<8x512xi1>, vector<8x512xf32>
    %c56 = arith.constant 56 : index
    %c0_75 = arith.constant 0 : index
    %142 = vector.load %arg8[%c56, %c0_75] : memref<72x512xf32, #tpu.memory_space<vmem>>, vector<8x512xf32>
    tpu.vector_store %arg8[%c56, %c0_75], %141 {strides = array<i32>} : memref<72x512xf32, #tpu.memory_space<vmem>>, vector<8x512xf32>,
    %c495_i32_76 = arith.constant 495 : i32
    %143 = tpu.dynamic_rotate %99 by %c495_i32_76 dim 1 : vector<8x512xf32>, i32 -> vector<8x512xf32>
    %cst_77 = arith.constant 0.000000e+00 : f32
    %144 = vector.shape_cast %41 : vector<1x512xi1> to vector<1x512xi1>
    %145 = vector.broadcast %144 : vector<1x512xi1> to vector<8x512xi1>
    %146 = vector.broadcast %cst_77 : f32 to vector<8x512xf32>
    %147 = arith.select %145, %143, %146 : vector<8x512xi1>, vector<8x512xf32>
    %c64 = arith.constant 64 : index
    %c0_78 = arith.constant 0 : index
    %148 = vector.load %arg8[%c64, %c0_78] : memref<72x512xf32, #tpu.memory_space<vmem>>, vector<8x512xf32>
    tpu.vector_store %arg8[%c64, %c0_78], %147 {strides = array<i32>} : memref<72x512xf32, #tpu.memory_space<vmem>>, vector<8x512xf32>,
    %c0_79 = arith.constant 0 : index
    %c0_80 = arith.constant 0 : index
    %149 = vector.load %arg8[%c0_79, %c0_80] : memref<72x512xf32, #tpu.memory_space<vmem>>, vector<72x512xf32>
    %cst_81 = arith.constant dense<0.000000e+00> : vector<4x512xf32>
    %150 = tpu.matmul %43, %149, %cst_81 {dimension_numbers = #tpu.dot_dimension_numbers<[1], [0], [0], [1], [0, 0, 1, 1], [], []>} : vector<4x72xf32>, vector<72x512xf32>, vector<4x512xf32> -> vector<4x512xf32>
    %c0_82 = arith.constant 0 : index
    %c0_83 = arith.constant 0 : index
    %151 = vector.load %arg4[%c0_82, %c0_83] : memref<4x1xf32, #tpu.memory_space<vmem>>, vector<4x1xf32>
    %152 = vector.broadcast %151 : vector<4x1xf32> to vector<4x512xf32>
    %153 = arith.addf %150, %152 : vector<4x512xf32>
    %154 = vector.extract_strided_slice %153 {offsets = [0, 0], sizes = [4, 256], strides = [1, 1]} : vector<4x512xf32> to vector<4x256xf32>
    %c0_84 = arith.constant 0 : index
    %c0_85 = arith.constant 0 : index
    %c0_86 = arith.constant 0 : index
    %155 = vector.load %arg5[%c0_84, %c0_85, %c0_86] : memref<2x4x256xf32, #tpu.memory_space<vmem>>, vector<1x4x256xf32>
    %156 = vector.shape_cast %155 : vector<1x4x256xf32> to vector<4x256xf32>
    %157 = vector.shape_cast %154 : vector<4x256xf32> to vector<1x4x256xf32>
    tpu.vector_store %arg5[%c0_84, %c0_85, %c0_86], %157 {strides = array<i32>} : memref<2x4x256xf32, #tpu.memory_space<vmem>>, vector<1x4x256xf32>,
    %158 = vector.extract_strided_slice %153 {offsets = [0, 256], sizes = [4, 256], strides = [1, 1]} : vector<4x512xf32> to vector<4x256xf32>
    %c1_87 = arith.constant 1 : index
    %c0_88 = arith.constant 0 : index
    %c0_89 = arith.constant 0 : index
    %159 = vector.load %arg5[%c1_87, %c0_88, %c0_89] : memref<2x4x256xf32, #tpu.memory_space<vmem>>, vector<1x4x256xf32>
    %160 = vector.shape_cast %159 : vector<1x4x256xf32> to vector<4x256xf32>
    %161 = vector.shape_cast %158 : vector<4x256xf32> to vector<1x4x256xf32>
    tpu.vector_store %arg5[%c1_87, %c0_88, %c0_89], %161 {strides = array<i32>} : memref<2x4x256xf32, #tpu.memory_space<vmem>>, vector<1x4x256xf32>,
    return
  }
}

</mosaic_0001>

<llo_original>
// kernel: tpu_custom_call.1
$region0: #{tpu_custom_call.1}
  #allocation0 [shape = 'u32[]', space=smem, size = 0x4, offset = 0x4, fixed_abs, tag = 'smem constant byte address 0x4 - core index']
  #allocation1 [shape = 'u32[72,128]{1,0:T(1,128)}', space=vmem, size = 0x9000, scoped, tag = 'internal scratch']
  #allocation2 [shape = 'f32[4,512]{1,0:T(4,128)}', space=vmem, size = 0x2000, scoped, tag = 'scratch operand']
  #allocation3 [shape = 'f32[36,512]{1,0:T(8,128)}', space=vmem, size = 0x14000, scoped, tag = 'scratch operand']
  #allocation4 [shape = 'f32[72,512]{1,0:T(8,128)}', space=vmem, size = 0x24000, scoped, tag = 'scratch operand']
  %s0 = inlined_call_operand.hbm [shape: f32[2,4,256], index: 0, kind: input, shape index: {}]
  %s1 = inlined_call_operand.vmem [shape: f32[8,36], index: 1, kind: input, shape index: {}]
  %s2 = inlined_call_operand.vmem [shape: f32[8,1], index: 2, kind: input, shape index: {}]
  %s3 = inlined_call_operand.vmem [shape: f32[4,72], index: 3, kind: input, shape index: {}]
  %s4 = inlined_call_operand.vmem [shape: f32[4,1], index: 4, kind: input, shape index: {}]
  %s5 = inlined_call_operand.hbm [shape: f32[2,4,256], index: 5, kind: output, shape index: {}]
  %s6 = sld [smem:[#allocation0]]
  $region34: #{tpu_custom_call.1} parent=0
    _
  %s8 = ssub.s32 1, %s6
  %s9 = scalar_select 0, %s8, %s6
  $region1: #{tpu_custom_call.1} parent=0
    #allocation5 [shape = 'u8[8192]{0}', space=vmem, size = 0x2000, scoped, tag = 'input window, operand 0, single buffered']
    #allocation6 [shape = 's32[1]{0}', space=sflag, size = 0x4, scoped, tag = 'scoped memory for tpu_custom_call.1']
    #allocation7 [shape = 's32[1]{0}', space=sflag, size = 0x4, scoped, tag = 'scoped memory for tpu_custom_call.1']
    #allocation8 [shape = 'u8[8192]{0}', space=vmem, size = 0x2000, scoped, tag = 'output window, operand 0, single buffered']
    %10 = vsyncpa [#allocation6], 0
    %11 = vsyncpa [#allocation7], 0
    // Predicated region
    $region2: #{tpu_custom_call.1} parent=1 // pred_check
      _
    $region3: #{tpu_custom_call.1} parent=1 // pred_check_branch
      %13 = sbr.rel (0) target = $region5
    $region4: #{tpu_custom_call.1} parent=1 // pred_region
      %15 = vsyncadd [#allocation6], 0
      %s16 = sshll.u32 %s0, 4
      %s17 = int_to_ptr.hbm [resolvable:$true] %s16
      %s18 = sshll.u32 [#allocation5], 4
      %s19 = int_to_ptr.vmem [resolvable:$true] %s18
      %24 = dma.hbm_to_vmem [thread:$0]  %s17, 256, %s19, [#allocation6], 128, 128, 8
    $region5: #{tpu_custom_call.1} parent=1 // pred_fallthru
      _
    // Predicated region
    $region6: #{tpu_custom_call.1} parent=1 // pred_check
      _
    $region7: #{tpu_custom_call.1} parent=1 // pred_check_branch
      %26 = sbr.rel (0) target = $region9
    $region8: #{tpu_custom_call.1} parent=1 // pred_region
      _
    $region9: #{tpu_custom_call.1} parent=1 // pred_fallthru
      _
    // Predicated region
    $region10: #{tpu_custom_call.1} parent=1 // pred_check
      _
    $region11: #{tpu_custom_call.1} parent=1 // pred_check_branch
      %28 = sbr.rel (0) target = $region13
    $region12: #{tpu_custom_call.1} parent=1 // pred_region
      _
    $region13: #{tpu_custom_call.1} parent=1 // pred_fallthru
      _
    // Predicated region
    $region14: #{tpu_custom_call.1} parent=1 // pred_check
      _
    $region15: #{tpu_custom_call.1} parent=1 // pred_check_branch
      %30 = sbr.rel (0) target = $region17
    $region16: #{tpu_custom_call.1} parent=1 // pred_region
      _
    $region17: #{tpu_custom_call.1} parent=1 // pred_fallthru
      _
    // Predicated region
    $region18: #{tpu_custom_call.1} parent=1 // pred_check
      _
    $region19: #{tpu_custom_call.1} parent=1 // pred_check_branch
      %32 = sbr.rel (0) target = $region21
    $region20: #{tpu_custom_call.1} parent=1 // pred_region
      _
    $region21: #{tpu_custom_call.1} parent=1 // pred_fallthru
      _
    // Predicated region
    $region22: #{tpu_custom_call.1} parent=1 // pred_check
      _
    $region23: #{tpu_custom_call.1} parent=1 // pred_check_branch
      %34 = sbr.rel (0) target = $region25
    $region24: #{tpu_custom_call.1} parent=1 // pred_region
      %36 = dma.done [#allocation6], 256
    $region25: #{tpu_custom_call.1} parent=1 // pred_fallthru
      _
    %v37 = vld [vmem:[#allocation5] sm:$0xff]
    %38 = vst [vmem:[#allocation2] sm:$0xff] %v37
    %s39 = scalar_lea.vmem [#allocation5], 8
    %v40 = vld [vmem:[%s39] sm:$0xff]
    %41 = vst [vmem:[#allocation2 + $0x8] sm:$0xff] %v40
    %v42 = vld [vmem:[#allocation2] sm:$0xff]
    %v43 = vld [vmem:[#allocation2 + $0x8] sm:$0xff]
    %v44 = vlaneseq
    %v45 = vand.u32 %v44, 127
    %v46 = vadd.s32 %v45, 128
    %v47 = vadd.s32 %v45, 256
    %v48 = vadd.s32 %v45, 384
    %v49 = vand.u32 %v45, 15
    %v50 = vand.u32 %v46, 15
    %v51 = vand.u32 %v47, 15
    %v52 = vand.u32 %v48, 15
    %v53 = vshra.s32 %v45, 4
    %v54 = vshra.s32 %v46, 4
    %v55 = vshra.s32 %v47, 4
    %v56 = vshra.s32 %v48, 4
    %v57 = vand.u32 %v53, 15
    %v58 = vand.u32 %v54, 15
    %v59 = vand.u32 %v55, 15
    %v60 = vand.u32 %v56, 15
    %vm61 = vcmp.ge.s32.totalorder %v57, 1
    %vm62 = vcmp.ge.s32.totalorder %v58, 1
    %vm63 = vcmp.ge.s32.totalorder %v59, 1
    %vm64 = vcmp.ge.s32.totalorder %v60, 1
    %vm65 = vcmp.ge.s32.totalorder %v49, 1
    %vm66 = vcmp.ge.s32.totalorder %v50, 1
    %vm67 = vcmp.ge.s32.totalorder %v51, 1
    %vm68 = vcmp.ge.s32.totalorder %v52, 1
    %vm69 = vmand %vm61, %vm65
    %vm70 = vmand %vm62, %vm66
    %vm71 = vmand %vm63, %vm67
    %vm72 = vmand %vm64, %vm68
    %vm73 = vcmp.le.s32.totalorder %v49, 14
    %vm74 = vcmp.le.s32.totalorder %v50, 14
    %vm75 = vcmp.le.s32.totalorder %v51, 14
    %vm76 = vcmp.le.s32.totalorder %v52, 14
    %vm77 = vmand %vm61, %vm73
    %vm78 = vmand %vm62, %vm74
    %vm79 = vmand %vm63, %vm75
    %vm80 = vmand %vm64, %vm76
    %vm81 = vcmp.le.s32.totalorder %v57, 14
    %vm82 = vcmp.le.s32.totalorder %v58, 14
    %vm83 = vcmp.le.s32.totalorder %v59, 14
    %vm84 = vcmp.le.s32.totalorder %v60, 14
    %vm85 = vmand %vm81, %vm65
    %vm86 = vmand %vm82, %vm66
    %vm87 = vmand %vm83, %vm67
    %vm88 = vmand %vm84, %vm68
    %vm89 = vmand %vm81, %vm73
    %vm90 = vmand %vm82, %vm74
    %vm91 = vmand %vm83, %vm75
    %vm92 = vmand %vm84, %vm76
    %v93 = vld [vmem:[%s1] sm:$0xff]
    %v94 = vld [vmem:[%s3] sm:$0xf]
    %97 = vst [vmem:[#allocation1] ss:$2 sm:$0xff] %v42
    %s98 = scalar_lea.vmem [#allocation1], 16
    %99 = vst [vmem:[%s98] ss:$2 sm:$0xff] %v43
    %v100 = vld.sshfl [vmem:[#allocation1] sm:$0xff pattern:$0x75316420]
    %v101 = vld.sshfl [vmem:[#allocation1 + $0x8] sm:$0xff pattern:$0x75316420]
    %v102 = vld.sshfl [vmem:[#allocation1 + $0x10] sm:$0xff pattern:$0x75316420]
    %v103 = vld.sshfl [vmem:[#allocation1 + $0x18] sm:$0xff pattern:$0x75316420]
    %108 = vrot.lane.b32.xlu0 %v100, 17
    %v109 = vpop.permute.xlu0 %108
    %110 = vrot.lane.b32.xlu0 %v101, 17
    %v111 = vpop.permute.xlu0 %110
    %112 = vrot.lane.b32.xlu0 %v102, 17
    %v113 = vpop.permute.xlu0 %112
    %114 = vrot.lane.b32.xlu0 %v103, 17
    %v115 = vpop.permute.xlu0 %114
    %vm116 = vcmp.lt.s32.totalorder %v45, 17
    %v117 = vsel %vm116, %v113, %v115
    %v118 = vsel %vm116, %v111, %v113
    %v119 = vsel %vm116, %v109, %v111
    %v120 = vsel %vm116, %v115, %v109
    %v121 = vsel %vm69, 1, 0
    %v122 = vsel %vm70, 1, 0
    %v123 = vsel %vm71, 1, 0
    %v124 = vsel %vm72, 1, 0
    %vm125 = vcmp.eq.s32.totalorder %v121, 1
    %vm126 = vcmp.eq.s32.totalorder %v122, 1
    %vm127 = vcmp.eq.s32.totalorder %v123, 1
    %vm128 = vcmp.eq.s32.totalorder %v124, 1
    %v129 = vsel %vm125, %v120, 0.0
    %v130 = vsel %vm126, %v119, 0.0
    %v131 = vsel %vm127, %v118, 0.0
    %v132 = vsel %vm128, %v117, 0.0
    %133 = vst [vmem:[#allocation3] sm:$0xf] %v129
    %134 = vst [vmem:[#allocation3 + $0x8] sm:$0xf] %v130
    %135 = vst [vmem:[#allocation3 + $0x10] sm:$0xf] %v131
    %136 = vst [vmem:[#allocation3 + $0x18] sm:$0xf] %v132
    %137 = vst [vmem:[#allocation1] ss:$2 sm:$0xff] %v42
    %s138 = scalar_lea.vmem [#allocation1], 16
    %139 = vst [vmem:[%s138] ss:$2 sm:$0xff] %v43
    %v140 = vld.sshfl [vmem:[#allocation1] sm:$0xff pattern:$0x75316420]
    %v141 = vld.sshfl [vmem:[#allocation1 + $0x8] sm:$0xff pattern:$0x75316420]
    %v142 = vld.sshfl [vmem:[#allocation1 + $0x10] sm:$0xff pattern:$0x75316420]
    %v143 = vld.sshfl [vmem:[#allocation1 + $0x18] sm:$0xff pattern:$0x75316420]
    %148 = vrot.lane.b32.xlu0 %v140, 16
    %v149 = vpop.permute.xlu0 %148
    %150 = vrot.lane.b32.xlu0 %v141, 16
    %v151 = vpop.permute.xlu0 %150
    %152 = vrot.lane.b32.xlu0 %v142, 16
    %v153 = vpop.permute.xlu0 %152
    %154 = vrot.lane.b32.xlu0 %v143, 16
    %v155 = vpop.permute.xlu0 %154
    %vm156 = vcmp.lt.s32.totalorder %v45, 16
    %v157 = vsel %vm156, %v153, %v155
    %v158 = vsel %vm156, %v151, %v153
    %v159 = vsel %vm156, %v149, %v151
    %v160 = vsel %vm156, %v155, %v149
    %v161 = vsel %vm61, 1, 0
    %v162 = vsel %vm62, 1, 0
    %v163 = vsel %vm63, 1, 0
    %v164 = vsel %vm64, 1, 0
    %vm165 = vcmp.eq.s32.totalorder %v161, 1
    %vm166 = vcmp.eq.s32.totalorder %v162, 1
    %vm167 = vcmp.eq.s32.totalorder %v163, 1
    %vm168 = vcmp.eq.s32.totalorder %v164, 1
    %v169 = vsel %vm165, %v160, 0.0
    %v170 = vsel %vm166, %v159, 0.0
    %v171 = vsel %vm167, %v158, 0.0
    %v172 = vsel %vm168, %v157, 0.0
    %v177 = vrot.slane %v169, 4
    %v178 = vrot.slane %v170, 4
    %v179 = vrot.slane %v171, 4
    %v180 = vrot.slane %v172, 4
    %185 = vst [vmem:[#allocation3] sm:$0xf0] %v177
    %186 = vst [vmem:[#allocation3 + $0x8] sm:$0xf0] %v178
    %187 = vst [vmem:[#allocation3 + $0x10] sm:$0xf0] %v179
    %188 = vst [vmem:[#allocation3 + $0x18] sm:$0xf0] %v180
    %189 = vst [vmem:[#allocation1] ss:$2 sm:$0xff] %v42
    %s190 = scalar_lea.vmem [#allocation1], 16
    %191 = vst [vmem:[%s190] ss:$2 sm:$0xff] %v43
    %v192 = vld.sshfl [vmem:[#allocation1] sm:$0xff pattern:$0x75316420]
    %v193 = vld.sshfl [vmem:[#allocation1 + $0x8] sm:$0xff pattern:$0x75316420]
    %v194 = vld.sshfl [vmem:[#allocation1 + $0x10] sm:$0xff pattern:$0x75316420]
    %v195 = vld.sshfl [vmem:[#allocation1 + $0x18] sm:$0xff pattern:$0x75316420]
    %200 = vrot.lane.b32.xlu0 %v192, 15
    %v201 = vpop.permute.xlu0 %200
    %202 = vrot.lane.b32.xlu0 %v193, 15
    %v203 = vpop.permute.xlu0 %202
    %204 = vrot.lane.b32.xlu0 %v194, 15
    %v205 = vpop.permute.xlu0 %204
    %206 = vrot.lane.b32.xlu0 %v195, 15
    %v207 = vpop.permute.xlu0 %206
    %vm208 = vcmp.lt.s32.totalorder %v45, 15
    %v209 = vsel %vm208, %v205, %v207
    %v210 = vsel %vm208, %v203, %v205
    %v211 = vsel %vm208, %v201, %v203
    %v212 = vsel %vm208, %v207, %v201
    %v213 = vsel %vm77, 1, 0
    %v214 = vsel %vm78, 1, 0
    %v215 = vsel %vm79, 1, 0
    %v216 = vsel %vm80, 1, 0
    %vm217 = vcmp.eq.s32.totalorder %v213, 1
    %vm218 = vcmp.eq.s32.totalorder %v214, 1
    %vm219 = vcmp.eq.s32.totalorder %v215, 1
    %vm220 = vcmp.eq.s32.totalorder %v216, 1
    %v221 = vsel %vm217, %v212, 0.0
    %v222 = vsel %vm218, %v211, 0.0
    %v223 = vsel %vm219, %v210, 0.0
    %v224 = vsel %vm220, %v209, 0.0
    %225 = vst [vmem:[#allocation3 + $0x20] sm:$0xf] %v221
    %226 = vst [vmem:[#allocation3 + $0x28] sm:$0xf] %v222
    %227 = vst [vmem:[#allocation3 + $0x30] sm:$0xf] %v223
    %228 = vst [vmem:[#allocation3 + $0x38] sm:$0xf] %v224
    %229 = vst [vmem:[#allocation1] ss:$2 sm:$0xff] %v42
    %s230 = scalar_lea.vmem [#allocation1], 16
    %231 = vst [vmem:[%s230] ss:$2 sm:$0xff] %v43
    %v232 = vld.sshfl [vmem:[#allocation1] sm:$0xff pattern:$0x75316420]
    %v233 = vld.sshfl [vmem:[#allocation1 + $0x8] sm:$0xff pattern:$0x75316420]
    %v234 = vld.sshfl [vmem:[#allocation1 + $0x10] sm:$0xff pattern:$0x75316420]
    %v235 = vld.sshfl [vmem:[#allocation1 + $0x18] sm:$0xff pattern:$0x75316420]
    %240 = vrot.lane.b32.xlu0 %v232, 1
    %v241 = vpop.permute.xlu0 %240
    %242 = vrot.lane.b32.xlu0 %v233, 1
    %v243 = vpop.permute.xlu0 %242
    %244 = vrot.lane.b32.xlu0 %v234, 1
    %v245 = vpop.permute.xlu0 %244
    %246 = vrot.lane.b32.xlu0 %v235, 1
    %v247 = vpop.permute.xlu0 %246
    %vm248 = vcmp.lt.s32.totalorder %v45, 1
    %v249 = vsel %vm248, %v245, %v247
    %v250 = vsel %vm248, %v243, %v245
    %v251 = vsel %vm248, %v241, %v243
    %v252 = vsel %vm248, %v247, %v241
    %v253 = vsel %vm65, 1, 0
    %v254 = vsel %vm66, 1, 0
    %v255 = vsel %vm67, 1, 0
    %v256 = vsel %vm68, 1, 0
    %vm257 = vcmp.eq.s32.totalorder %v253, 1
    %vm258 = vcmp.eq.s32.totalorder %v254, 1
    %vm259 = vcmp.eq.s32.totalorder %v255, 1
    %vm260 = vcmp.eq.s32.totalorder %v256, 1
    %v261 = vsel %vm257, %v252, 0.0
    %v262 = vsel %vm258, %v251, 0.0
    %v263 = vsel %vm259, %v250, 0.0
    %v264 = vsel %vm260, %v249, 0.0
    %v269 = vrot.slane %v261, 4
    %v270 = vrot.slane %v262, 4
    %v271 = vrot.slane %v263, 4
    %v272 = vrot.slane %v264, 4
    %277 = vst [vmem:[#allocation3 + $0x20] sm:$0xf0] %v269
    %278 = vst [vmem:[#allocation3 + $0x28] sm:$0xf0] %v270
    %279 = vst [vmem:[#allocation3 + $0x30] sm:$0xf0] %v271
    %280 = vst [vmem:[#allocation3 + $0x38] sm:$0xf0] %v272
    %281 = vst [vmem:[#allocation1] ss:$2 sm:$0xff] %v42
    %s282 = scalar_lea.vmem [#allocation1], 16
    %283 = vst [vmem:[%s282] ss:$2 sm:$0xff] %v43
    %v284 = vld.sshfl [vmem:[#allocation1] sm:$0xff pattern:$0x75316420]
    %v285 = vld.sshfl [vmem:[#allocation1 + $0x8] sm:$0xff pattern:$0x75316420]
    %v286 = vld.sshfl [vmem:[#allocation1 + $0x10] sm:$0xff pattern:$0x75316420]
    %v287 = vld.sshfl [vmem:[#allocation1 + $0x18] sm:$0xff pattern:$0x75316420]
    %292 = vst [vmem:[#allocation3 + $0x40] sm:$0xf] %v284
    %293 = vst [vmem:[#allocation3 + $0x48] sm:$0xf] %v285
    %294 = vst [vmem:[#allocation3 + $0x50] sm:$0xf] %v286
    %295 = vst [vmem:[#allocation3 + $0x58] sm:$0xf] %v287
    %296 = vst [vmem:[#allocation1] ss:$2 sm:$0xff] %v42
    %s297 = scalar_lea.vmem [#allocation1], 16
    %298 = vst [vmem:[%s297] ss:$2 sm:$0xff] %v43
    %v299 = vld.sshfl [vmem:[#allocation1] sm:$0xff pattern:$0x75316420]
    %v300 = vld.sshfl [vmem:[#allocation1 + $0x8] sm:$0xff pattern:$0x75316420]
    %v301 = vld.sshfl [vmem:[#allocation1 + $0x10] sm:$0xff pattern:$0x75316420]
    %v302 = vld.sshfl [vmem:[#allocation1 + $0x18] sm:$0xff pattern:$0x75316420]
    %307 = vrot.lane.b32.xlu0 %v299, 127
    %v308 = vpop.permute.xlu0 %307
    %309 = vrot.lane.b32.xlu0 %v300, 127
    %v310 = vpop.permute.xlu0 %309
    %311 = vrot.lane.b32.xlu0 %v301, 127
    %v312 = vpop.permute.xlu0 %311
    %313 = vrot.lane.b32.xlu0 %v302, 127
    %v314 = vpop.permute.xlu0 %313
    %vm315 = vcmp.lt.s32.totalorder %v45, 127
    %v316 = vsel %vm315, %v312, %v314
    %v317 = vsel %vm315, %v310, %v312
    %v318 = vsel %vm315, %v308, %v310
    %v319 = vsel %vm315, %v314, %v308
    %v320 = vsel %vm73, 1, 0
    %v321 = vsel %vm74, 1, 0
    %v322 = vsel %vm75, 1, 0
    %v323 = vsel %vm76, 1, 0
    %vm324 = vcmp.eq.s32.totalorder %v320, 1
    %vm325 = vcmp.eq.s32.totalorder %v321, 1
    %vm326 = vcmp.eq.s32.totalorder %v322, 1
    %vm327 = vcmp.eq.s32.totalorder %v323, 1
    %v328 = vsel %vm324, %v318, 0.0
    %v329 = vsel %vm325, %v317, 0.0
    %v330 = vsel %vm326, %v316, 0.0
    %v331 = vsel %vm327, %v319, 0.0
    %v336 = vrot.slane %v328, 4
    %v337 = vrot.slane %v329, 4
    %v338 = vrot.slane %v330, 4
    %v339 = vrot.slane %v331, 4
    %344 = vst [vmem:[#allocation3 + $0x40] sm:$0xf0] %v336
    %345 = vst [vmem:[#allocation3 + $0x48] sm:$0xf0] %v337
    %346 = vst [vmem:[#allocation3 + $0x50] sm:$0xf0] %v338
    %347 = vst [vmem:[#allocation3 + $0x58] sm:$0xf0] %v339
    %348 = vst [vmem:[#allocation1] ss:$2 sm:$0xff] %v42
    %s349 = scalar_lea.vmem [#allocation1], 16
    %350 = vst [vmem:[%s349] ss:$2 sm:$0xff] %v43
    %v351 = vld.sshfl [vmem:[#allocation1] sm:$0xff pattern:$0x75316420]
    %v352 = vld.sshfl [vmem:[#allocation1 + $0x8] sm:$0xff pattern:$0x75316420]
    %v353 = vld.sshfl [vmem:[#allocation1 + $0x10] sm:$0xff pattern:$0x75316420]
    %v354 = vld.sshfl [vmem:[#allocation1 + $0x18] sm:$0xff pattern:$0x75316420]
    %359 = vrot.lane.b32.xlu0 %v351, 113
    %v360 = vpop.permute.xlu0 %359
    %361 = vrot.lane.b32.xlu0 %v352, 113
    %v362 = vpop.permute.xlu0 %361
    %363 = vrot.lane.b32.xlu0 %v353, 113
    %v364 = vpop.permute.xlu0 %363
    %365 = vrot.lane.b32.xlu0 %v354, 113
    %v366 = vpop.permute.xlu0 %365
    %vm367 = vcmp.lt.s32.totalorder %v45, 113
    %v368 = vsel %vm367, %v364, %v366
    %v369 = vsel %vm367, %v362, %v364
    %v370 = vsel %vm367, %v360, %v362
    %v371 = vsel %vm367, %v366, %v360
    %v372 = vsel %vm85, 1, 0
    %v373 = vsel %vm86, 1, 0
    %v374 = vsel %vm87, 1, 0
    %v375 = vsel %vm88, 1, 0
    %vm376 = vcmp.eq.s32.totalorder %v372, 1
    %vm377 = vcmp.eq.s32.totalorder %v373, 1
    %vm378 = vcmp.eq.s32.totalorder %v374, 1
    %vm379 = vcmp.eq.s32.totalorder %v375, 1
    %v380 = vsel %vm376, %v370, 0.0
    %v381 = vsel %vm377, %v369, 0.0
    %v382 = vsel %vm378, %v368, 0.0
    %v383 = vsel %vm379, %v371, 0.0
    %384 = vst [vmem:[#allocation3 + $0x60] sm:$0xf] %v380
    %385 = vst [vmem:[#allocation3 + $0x68] sm:$0xf] %v381
    %386 = vst [vmem:[#allocation3 + $0x70] sm:$0xf] %v382
    %387 = vst [vmem:[#allocation3 + $0x78] sm:$0xf] %v383
    %388 = vst [vmem:[#allocation1] ss:$2 sm:$0xff] %v42
    %s389 = scalar_lea.vmem [#allocation1], 16
    %390 = vst [vmem:[%s389] ss:$2 sm:$0xff] %v43
    %v391 = vld.sshfl [vmem:[#allocation1] sm:$0xff pattern:$0x75316420]
    %v392 = vld.sshfl [vmem:[#allocation1 + $0x8] sm:$0xff pattern:$0x75316420]
    %v393 = vld.sshfl [vmem:[#allocation1 + $0x10] sm:$0xff pattern:$0x75316420]
    %v394 = vld.sshfl [vmem:[#allocation1 + $0x18] sm:$0xff pattern:$0x75316420]
    %399 = vrot.lane.b32.xlu0 %v391, 112
    %v400 = vpop.permute.xlu0 %399
    %401 = vrot.lane.b32.xlu0 %v392, 112
    %v402 = vpop.permute.xlu0 %401
    %403 = vrot.lane.b32.xlu0 %v393, 112
    %v404 = vpop.permute.xlu0 %403
    %405 = vrot.lane.b32.xlu0 %v394, 112
    %v406 = vpop.permute.xlu0 %405
    %vm407 = vcmp.lt.s32.totalorder %v45, 112
    %v408 = vsel %vm407, %v404, %v406
    %v409 = vsel %vm407, %v402, %v404
    %v410 = vsel %vm407, %v400, %v402
    %v411 = vsel %vm407, %v406, %v400
    %v412 = vsel %vm81, 1, 0
    %v413 = vsel %vm82, 1, 0
    %v414 = vsel %vm83, 1, 0
    %v415 = vsel %vm84, 1, 0
    %vm416 = vcmp.eq.s32.totalorder %v412, 1
    %vm417 = vcmp.eq.s32.totalorder %v413, 1
    %vm418 = vcmp.eq.s32.totalorder %v414, 1
    %vm419 = vcmp.eq.s32.totalorder %v415, 1
    %v420 = vsel %vm416, %v410, 0.0
    %v421 = vsel %vm417, %v409, 0.0
    %v422 = vsel %vm418, %v408, 0.0
    %v423 = vsel %vm419, %v411, 0.0
    %v428 = vrot.slane %v420, 4
    %v429 = vrot.slane %v421, 4
    %v430 = vrot.slane %v422, 4
    %v431 = vrot.slane %v423, 4
    %436 = vst [vmem:[#allocation3 + $0x60] sm:$0xf0] %v428
    %437 = vst [vmem:[#allocation3 + $0x68] sm:$0xf0] %v429
    %438 = vst [vmem:[#allocation3 + $0x70] sm:$0xf0] %v430
    %439 = vst [vmem:[#allocation3 + $0x78] sm:$0xf0] %v431
    %440 = vst [vmem:[#allocation1] ss:$2 sm:$0xff] %v42
    %s441 = scalar_lea.vmem [#allocation1], 16
    %442 = vst [vmem:[%s441] ss:$2 sm:$0xff] %v43
    %v443 = vld.sshfl [vmem:[#allocation1] sm:$0xff pattern:$0x75316420]
    %v444 = vld.sshfl [vmem:[#allocation1 + $0x8] sm:$0xff pattern:$0x75316420]
    %v445 = vld.sshfl [vmem:[#allocation1 + $0x10] sm:$0xff pattern:$0x75316420]
    %v446 = vld.sshfl [vmem:[#allocation1 + $0x18] sm:$0xff pattern:$0x75316420]
    %451 = vrot.lane.b32.xlu0 %v443, 111
    %v452 = vpop.permute.xlu0 %451
    %453 = vrot.lane.b32.xlu0 %v444, 111
    %v454 = vpop.permute.xlu0 %453
    %455 = vrot.lane.b32.xlu0 %v445, 111
    %v456 = vpop.permute.xlu0 %455
    %457 = vrot.lane.b32.xlu0 %v446, 111
    %v458 = vpop.permute.xlu0 %457
    %vm459 = vcmp.lt.s32.totalorder %v45, 111
    %v460 = vsel %vm459, %v456, %v458
    %v461 = vsel %vm459, %v454, %v456
    %v462 = vsel %vm459, %v452, %v454
    %v463 = vsel %vm459, %v458, %v452
    %v464 = vsel %vm89, 1, 0
    %v465 = vsel %vm90, 1, 0
    %v466 = vsel %vm91, 1, 0
    %v467 = vsel %vm92, 1, 0
    %vm468 = vcmp.eq.s32.totalorder %v464, 1
    %vm469 = vcmp.eq.s32.totalorder %v465, 1
    %vm470 = vcmp.eq.s32.totalorder %v466, 1
    %vm471 = vcmp.eq.s32.totalorder %v467, 1
    %v472 = vsel %vm468, %v462, 0.0
    %v473 = vsel %vm469, %v461, 0.0
    %v474 = vsel %vm470, %v460, 0.0
    %v475 = vsel %vm471, %v463, 0.0
    %476 = vst [vmem:[#allocation3 + $0x80] sm:$0xf] %v472
    %477 = vst [vmem:[#allocation3 + $0x88] sm:$0xf] %v473
    %478 = vst [vmem:[#allocation3 + $0x90] sm:$0xf] %v474
    %479 = vst [vmem:[#allocation3 + $0x98] sm:$0xf] %v475
    %v480 = vld [vmem:[#allocation3] sm:$0xff]
    %v481 = vld [vmem:[#allocation3 + $0x8] sm:$0xff]
    %v482 = vld [vmem:[#allocation3 + $0x10] sm:$0xff]
    %v483 = vld [vmem:[#allocation3 + $0x18] sm:$0xff]
    %v484 = vld [vmem:[#allocation3 + $0x20] sm:$0xff]
    %v485 = vld [vmem:[#allocation3 + $0x28] sm:$0xff]
    %v486 = vld [vmem:[#allocation3 + $0x30] sm:$0xff]
    %v487 = vld [vmem:[#allocation3 + $0x38] sm:$0xff]
    %v488 = vld [vmem:[#allocation3 + $0x40] sm:$0xff]
    %v489 = vld [vmem:[#allocation3 + $0x48] sm:$0xff]
    %v490 = vld [vmem:[#allocation3 + $0x50] sm:$0xff]
    %v491 = vld [vmem:[#allocation3 + $0x58] sm:$0xff]
    %v492 = vld [vmem:[#allocation3 + $0x60] sm:$0xff]
    %v493 = vld [vmem:[#allocation3 + $0x68] sm:$0xff]
    %v494 = vld [vmem:[#allocation3 + $0x70] sm:$0xff]
    %v495 = vld [vmem:[#allocation3 + $0x78] sm:$0xff]
    %v496 = vld [vmem:[#allocation3 + $0x80] sm:$0xf]
    %v497 = vld [vmem:[#allocation3 + $0x88] sm:$0xf]
    %v498 = vld [vmem:[#allocation3 + $0x90] sm:$0xf]
    %v499 = vld [vmem:[#allocation3 + $0x98] sm:$0xf]
    %v500 = vld [vmem:[%s2] sm:$0xff]
    %502 = vset.pattern.permute.xlu0 0
    %503 = vperm.xlu0 %502, %v500
    %v504 = vpop.permute.xlu0 %503
    %vm506 = vcmask 293888
    %v508 = vsel %vm506, %v93, 0
    %vm510 = vcmask 1043456
    %v512 = vsel %vm510, %v496, 0
    %v515 = vsel %vm510, %v497, 0
    %v518 = vsel %vm510, %v498, 0
    %v521 = vsel %vm510, %v499, 0
    %523 = vmatpush.msra.mxu0 0.0
    %524 = vmatpush.msra.mxu0 0.0
    %525 = vmatpush.msra.mxu0 0.0
    %526 = vmatpush.msra.mxu0 0.0
    %527 = vmatpush.msra.mxu0 0.0
    %528 = vmatpush.msra.mxu0 0.0
    %529 = vmatpush.msra.mxu0 0.0
    %530 = vmatpush.msra.mxu0 0.0
    %531 = vmatpush.msra.mxu0 0.0
    %532 = vmatpush.msra.mxu0 0.0
    %533 = vmatpush.msra.mxu0 0.0
    %534 = vmatpush.msra.mxu0 %v512
    %535 = vmatpush.msra.mxu0 %v492
    %536 = vmatpush.msra.mxu0 %v488
    %537 = vmatpush.msra.mxu0 %v484
    %538 = vmatpush.msra.mxu0 %v480
    %539 = vmatmul.f32.gmra.mxu0 %v508
    %v540 = vpop.f32.mrf.mxu0
    %v541 = vadd.f32 %v504, %v540
    %542 = vdwg.mxu0
    %543 = vmatpush.msra.mxu0 0.0
    %544 = vmatpush.msra.mxu0 0.0
    %545 = vmatpush.msra.mxu0 0.0
    %546 = vmatpush.msra.mxu0 0.0
    %547 = vmatpush.msra.mxu0 0.0
    %548 = vmatpush.msra.mxu0 0.0
    %549 = vmatpush.msra.mxu0 0.0
    %550 = vmatpush.msra.mxu0 0.0
    %551 = vmatpush.msra.mxu0 0.0
    %552 = vmatpush.msra.mxu0 0.0
    %553 = vmatpush.msra.mxu0 0.0
    %554 = vmatpush.msra.mxu0 %v515
    %555 = vmatpush.msra.mxu0 %v493
    %556 = vmatpush.msra.mxu0 %v489
    %557 = vmatpush.msra.mxu0 %v485
    %558 = vmatpush.msra.mxu0 %v481
    %559 = vmatmul.f32.gmra.mxu0 %v508
    %v560 = vpop.f32.mrf.mxu0
    %v561 = vadd.f32 %v504, %v560
    %562 = vdwg.mxu0
    %563 = vmatpush.msra.mxu0 0.0
    %564 = vmatpush.msra.mxu0 0.0
    %565 = vmatpush.msra.mxu0 0.0
    %566 = vmatpush.msra.mxu0 0.0
    %567 = vmatpush.msra.mxu0 0.0
    %568 = vmatpush.msra.mxu0 0.0
    %569 = vmatpush.msra.mxu0 0.0
    %570 = vmatpush.msra.mxu0 0.0
    %571 = vmatpush.msra.mxu0 0.0
    %572 = vmatpush.msra.mxu0 0.0
    %573 = vmatpush.msra.mxu0 0.0
    %574 = vmatpush.msra.mxu0 %v518
    %575 = vmatpush.msra.mxu0 %v494
    %576 = vmatpush.msra.mxu0 %v490
    %577 = vmatpush.msra.mxu0 %v486
    %578 = vmatpush.msra.mxu0 %v482
    %579 = vmatmul.f32.gmra.mxu0 %v508
    %v580 = vpop.f32.mrf.mxu0
    %v581 = vadd.f32 %v504, %v580
    %582 = vdwg.mxu0
    %583 = vmatpush.msra.mxu0 0.0
    %584 = vmatpush.msra.mxu0 0.0
    %585 = vmatpush.msra.mxu0 0.0
    %586 = vmatpush.msra.mxu0 0.0
    %587 = vmatpush.msra.mxu0 0.0
    %588 = vmatpush.msra.mxu0 0.0
    %589 = vmatpush.msra.mxu0 0.0
    %590 = vmatpush.msra.mxu0 0.0
    %591 = vmatpush.msra.mxu0 0.0
    %592 = vmatpush.msra.mxu0 0.0
    %593 = vmatpush.msra.mxu0 0.0
    %594 = vmatpush.msra.mxu0 %v521
    %595 = vmatpush.msra.mxu0 %v495
    %596 = vmatpush.msra.mxu0 %v491
    %597 = vmatpush.msra.mxu0 %v487
    %598 = vmatpush.msra.mxu0 %v483
    %599 = vmatmul.f32.gmra.mxu0 %v508
    %v600 = vpop.f32.mrf.mxu0
    %v601 = vadd.f32 %v504, %v600
    %602 = vdwg.mxu0
    %v603 = vmax.f32 %v541, 0.0
    %v604 = vmax.f32 %v561, 0.0
    %v605 = vmax.f32 %v581, 0.0
    %v606 = vmax.f32 %v601, 0.0
    %607 = vrot.lane.b32.xlu0 %v603, 17
    %v608 = vpop.permute.xlu0 %607
    %609 = vrot.lane.b32.xlu0 %v604, 17
    %v610 = vpop.permute.xlu0 %609
    %611 = vrot.lane.b32.xlu0 %v605, 17
    %v612 = vpop.permute.xlu0 %611
    %613 = vrot.lane.b32.xlu0 %v606, 17
    %v614 = vpop.permute.xlu0 %613
    %v615 = vsel %vm116, %v612, %v614
    %v616 = vsel %vm116, %v610, %v612
    %v617 = vsel %vm116, %v608, %v610
    %v618 = vsel %vm116, %v614, %v608
    %v619 = vsel %vm125, %v618, 0.0
    %v620 = vsel %vm126, %v617, 0.0
    %v621 = vsel %vm127, %v616, 0.0
    %v622 = vsel %vm128, %v615, 0.0
    %623 = vst [vmem:[#allocation4] sm:$0xff] %v619
    %624 = vst [vmem:[#allocation4 + $0x8] sm:$0xff] %v620
    %625 = vst [vmem:[#allocation4 + $0x10] sm:$0xff] %v621
    %626 = vst [vmem:[#allocation4 + $0x18] sm:$0xff] %v622
    %627 = vrot.lane.b32.xlu0 %v603, 16
    %v628 = vpop.permute.xlu0 %627
    %629 = vrot.lane.b32.xlu0 %v604, 16
    %v630 = vpop.permute.xlu0 %629
    %631 = vrot.lane.b32.xlu0 %v605, 16
    %v632 = vpop.permute.xlu0 %631
    %633 = vrot.lane.b32.xlu0 %v606, 16
    %v634 = vpop.permute.xlu0 %633
    %v635 = vsel %vm156, %v632, %v634
    %v636 = vsel %vm156, %v630, %v632
    %v637 = vsel %vm156, %v628, %v630
    %v638 = vsel %vm156, %v634, %v628
    %v639 = vsel %vm165, %v638, 0.0
    %v640 = vsel %vm166, %v637, 0.0
    %v641 = vsel %vm167, %v636, 0.0
    %v642 = vsel %vm168, %v635, 0.0
    %643 = vst [vmem:[#allocation4 + $0x20] sm:$0xff] %v639
    %644 = vst [vmem:[#allocation4 + $0x28] sm:$0xff] %v640
    %645 = vst [vmem:[#allocation4 + $0x30] sm:$0xff] %v641
    %646 = vst [vmem:[#allocation4 + $0x38] sm:$0xff] %v642
    %647 = vrot.lane.b32.xlu0 %v603, 15
    %v648 = vpop.permute.xlu0 %647
    %649 = vrot.lane.b32.xlu0 %v604, 15
    %v650 = vpop.permute.xlu0 %649
    %651 = vrot.lane.b32.xlu0 %v605, 15
    %v652 = vpop.permute.xlu0 %651
    %653 = vrot.lane.b32.xlu0 %v606, 15
    %v654 = vpop.permute.xlu0 %653
    %v655 = vsel %vm208, %v652, %v654
    %v656 = vsel %vm208, %v650, %v652
    %v657 = vsel %vm208, %v648, %v650
    %v658 = vsel %vm208, %v654, %v648
    %v659 = vsel %vm217, %v658, 0.0
    %v660 = vsel %vm218, %v657, 0.0
    %v661 = vsel %vm219, %v656, 0.0
    %v662 = vsel %vm220, %v655, 0.0
    %663 = vst [vmem:[#allocation4 + $0x40] sm:$0xff] %v659
    %664 = vst [vmem:[#allocation4 + $0x48] sm:$0xff] %v660
    %665 = vst [vmem:[#allocation4 + $0x50] sm:$0xff] %v661
    %666 = vst [vmem:[#allocation4 + $0x58] sm:$0xff] %v662
    %667 = vrot.lane.b32.xlu0 %v603, 1
    %v668 = vpop.permute.xlu0 %667
    %669 = vrot.lane.b32.xlu0 %v604, 1
    %v670 = vpop.permute.xlu0 %669
    %671 = vrot.lane.b32.xlu0 %v605, 1
    %v672 = vpop.permute.xlu0 %671
    %673 = vrot.lane.b32.xlu0 %v606, 1
    %v674 = vpop.permute.xlu0 %673
    %v675 = vsel %vm248, %v672, %v674
    %v676 = vsel %vm248, %v670, %v672
    %v677 = vsel %vm248, %v668, %v670
    %v678 = vsel %vm248, %v674, %v668
    %v679 = vsel %vm257, %v678, 0.0
    %v680 = vsel %vm258, %v677, 0.0
    %v681 = vsel %vm259, %v676, 0.0
    %v682 = vsel %vm260, %v675, 0.0
    %683 = vst [vmem:[#allocation4 + $0x60] sm:$0xff] %v679
    %684 = vst [vmem:[#allocation4 + $0x68] sm:$0xff] %v680
    %685 = vst [vmem:[#allocation4 + $0x70] sm:$0xff] %v681
    %686 = vst [vmem:[#allocation4 + $0x78] sm:$0xff] %v682
    %687 = vst [vmem:[#allocation4 + $0x80] sm:$0xff] %v603
    %688 = vst [vmem:[#allocation4 + $0x88] sm:$0xff] %v604
    %689 = vst [vmem:[#allocation4 + $0x90] sm:$0xff] %v605
    %690 = vst [vmem:[#allocation4 + $0x98] sm:$0xff] %v606
    %691 = vrot.lane.b32.xlu0 %v603, 127
    %v692 = vpop.permute.xlu0 %691
    %693 = vrot.lane.b32.xlu0 %v604, 127
    %v694 = vpop.permute.xlu0 %693
    %695 = vrot.lane.b32.xlu0 %v605, 127
    %v696 = vpop.permute.xlu0 %695
    %697 = vrot.lane.b32.xlu0 %v606, 127
    %v698 = vpop.permute.xlu0 %697
    %v699 = vsel %vm315, %v696, %v698
    %v700 = vsel %vm315, %v694, %v696
    %v701 = vsel %vm315, %v692, %v694
    %v702 = vsel %vm315, %v698, %v692
    %v703 = vsel %vm324, %v701, 0.0
    %v704 = vsel %vm325, %v700, 0.0
    %v705 = vsel %vm326, %v699, 0.0
    %v706 = vsel %vm327, %v702, 0.0
    %707 = vst [vmem:[#allocation4 + $0xa0] sm:$0xff] %v703
    %708 = vst [vmem:[#allocation4 + $0xa8] sm:$0xff] %v704
    %709 = vst [vmem:[#allocation4 + $0xb0] sm:$0xff] %v705
    %710 = vst [vmem:[#allocation4 + $0xb8] sm:$0xff] %v706
    %711 = vrot.lane.b32.xlu0 %v603, 113
    %v712 = vpop.permute.xlu0 %711
    %713 = vrot.lane.b32.xlu0 %v604, 113
    %v714 = vpop.permute.xlu0 %713
    %715 = vrot.lane.b32.xlu0 %v605, 113
    %v716 = vpop.permute.xlu0 %715
    %717 = vrot.lane.b32.xlu0 %v606, 113
    %v718 = vpop.permute.xlu0 %717
    %v719 = vsel %vm367, %v716, %v718
    %v720 = vsel %vm367, %v714, %v716
    %v721 = vsel %vm367, %v712, %v714
    %v722 = vsel %vm367, %v718, %v712
    %v723 = vsel %vm376, %v721, 0.0
    %v724 = vsel %vm377, %v720, 0.0
    %v725 = vsel %vm378, %v719, 0.0
    %v726 = vsel %vm379, %v722, 0.0
    %727 = vst [vmem:[#allocation4 + $0xc0] sm:$0xff] %v723
    %728 = vst [vmem:[#allocation4 + $0xc8] sm:$0xff] %v724
    %729 = vst [vmem:[#allocation4 + $0xd0] sm:$0xff] %v725
    %730 = vst [vmem:[#allocation4 + $0xd8] sm:$0xff] %v726
    %731 = vrot.lane.b32.xlu0 %v603, 112
    %v732 = vpop.permute.xlu0 %731
    %733 = vrot.lane.b32.xlu0 %v604, 112
    %v734 = vpop.permute.xlu0 %733
    %735 = vrot.lane.b32.xlu0 %v605, 112
    %v736 = vpop.permute.xlu0 %735
    %737 = vrot.lane.b32.xlu0 %v606, 112
    %v738 = vpop.permute.xlu0 %737
    %v739 = vsel %vm407, %v736, %v738
    %v740 = vsel %vm407, %v734, %v736
    %v741 = vsel %vm407, %v732, %v734
    %v742 = vsel %vm407, %v738, %v732
    %v743 = vsel %vm416, %v741, 0.0
    %v744 = vsel %vm417, %v740, 0.0
    %v745 = vsel %vm418, %v739, 0.0
    %v746 = vsel %vm419, %v742, 0.0
    %747 = vst [vmem:[#allocation4 + $0xe0] sm:$0xff] %v743
    %748 = vst [vmem:[#allocation4 + $0xe8] sm:$0xff] %v744
    %749 = vst [vmem:[#allocation4 + $0xf0] sm:$0xff] %v745
    %750 = vst [vmem:[#allocation4 + $0xf8] sm:$0xff] %v746
    %751 = vrot.lane.b32.xlu0 %v603, 111
    %v752 = vpop.permute.xlu0 %751
    %753 = vrot.lane.b32.xlu0 %v604, 111
    %v754 = vpop.permute.xlu0 %753
    %755 = vrot.lane.b32.xlu0 %v605, 111
    %v756 = vpop.permute.xlu0 %755
    %757 = vrot.lane.b32.xlu0 %v606, 111
    %v758 = vpop.permute.xlu0 %757
    %v759 = vsel %vm459, %v756, %v758
    %v760 = vsel %vm459, %v754, %v756
    %v761 = vsel %vm459, %v752, %v754
    %v762 = vsel %vm459, %v758, %v752
    %v763 = vsel %vm468, %v761, 0.0
    %v764 = vsel %vm469, %v760, 0.0
    %v765 = vsel %vm470, %v759, 0.0
    %v766 = vsel %vm471, %v762, 0.0
    %767 = vst [vmem:[#allocation4 + $0x100] sm:$0xff] %v763
    %768 = vst [vmem:[#allocation4 + $0x108] sm:$0xff] %v764
    %769 = vst [vmem:[#allocation4 + $0x110] sm:$0xff] %v765
    %770 = vst [vmem:[#allocation4 + $0x118] sm:$0xff] %v766
    %v771 = vld [vmem:[#allocation4] sm:$0xff]
    %v772 = vld [vmem:[#allocation4 + $0x8] sm:$0xff]
    %v773 = vld [vmem:[#allocation4 + $0x10] sm:$0xff]
    %v774 = vld [vmem:[#allocation4 + $0x18] sm:$0xff]
    %v775 = vld [vmem:[#allocation4 + $0x20] sm:$0xff]
    %v776 = vld [vmem:[#allocation4 + $0x28] sm:$0xff]
    %v777 = vld [vmem:[#allocation4 + $0x30] sm:$0xff]
    %v778 = vld [vmem:[#allocation4 + $0x38] sm:$0xff]
    %v779 = vld [vmem:[#allocation4 + $0x40] sm:$0xff]
    %v780 = vld [vmem:[#allocation4 + $0x48] sm:$0xff]
    %v781 = vld [vmem:[#allocation4 + $0x50] sm:$0xff]
    %v782 = vld [vmem:[#allocation4 + $0x58] sm:$0xff]
    %v783 = vld [vmem:[#allocation4 + $0x60] sm:$0xff]
    %v784 = vld [vmem:[#allocation4 + $0x68] sm:$0xff]
    %v785 = vld [vmem:[#allocation4 + $0x70] sm:$0xff]
    %v786 = vld [vmem:[#allocation4 + $0x78] sm:$0xff]
    %v787 = vld [vmem:[#allocation4 + $0x80] sm:$0xff]
    %v788 = vld [vmem:[#allocation4 + $0x88] sm:$0xff]
    %v789 = vld [vmem:[#allocation4 + $0x90] sm:$0xff]
    %v790 = vld [vmem:[#allocation4 + $0x98] sm:$0xff]
    %v791 = vld [vmem:[#allocation4 + $0xa0] sm:$0xff]
    %v792 = vld [vmem:[#allocation4 + $0xa8] sm:$0xff]
    %v793 = vld [vmem:[#allocation4 + $0xb0] sm:$0xff]
    %v794 = vld [vmem:[#allocation4 + $0xb8] sm:$0xff]
    %v795 = vld [vmem:[#allocation4 + $0xc0] sm:$0xff]
    %v796 = vld [vmem:[#allocation4 + $0xc8] sm:$0xff]
    %v797 = vld [vmem:[#allocation4 + $0xd0] sm:$0xff]
    %v798 = vld [vmem:[#allocation4 + $0xd8] sm:$0xff]
    %v799 = vld [vmem:[#allocation4 + $0xe0] sm:$0xff]
    %v800 = vld [vmem:[#allocation4 + $0xe8] sm:$0xff]
    %v801 = vld [vmem:[#allocation4 + $0xf0] sm:$0xff]
    %v802 = vld [vmem:[#allocation4 + $0xf8] sm:$0xff]
    %v803 = vld [vmem:[#allocation4 + $0x100] sm:$0xff]
    %v804 = vld [vmem:[#allocation4 + $0x108] sm:$0xff]
    %v805 = vld [vmem:[#allocation4 + $0x110] sm:$0xff]
    %v806 = vld [vmem:[#allocation4 + $0x118] sm:$0xff]
    %v807 = vld [vmem:[%s4] sm:$0xf]
    %809 = vset.pattern.permute.xlu0 0
    %810 = vperm.xlu0 %809, %v807
    %v811 = vpop.permute.xlu0 %810
    %vm813 = vcmask 588800
    %v815 = vsel %vm813, %v94, 0
    %817 = vmatpush.msra.mxu0 0.0
    %818 = vmatpush.msra.mxu0 0.0
    %819 = vmatpush.msra.mxu0 0.0
    %820 = vmatpush.msra.mxu0 0.0
    %821 = vmatpush.msra.mxu0 0.0
    %822 = vmatpush.msra.mxu0 0.0
    %823 = vmatpush.msra.mxu0 0.0
    %824 = vmatpush.msra.mxu0 %v803
    %825 = vmatpush.msra.mxu0 %v799
    %826 = vmatpush.msra.mxu0 %v795
    %827 = vmatpush.msra.mxu0 %v791
    %828 = vmatpush.msra.mxu0 %v787
    %829 = vmatpush.msra.mxu0 %v783
    %830 = vmatpush.msra.mxu0 %v779
    %831 = vmatpush.msra.mxu0 %v775
    %832 = vmatpush.msra.mxu0 %v771
    %833 = vmatmul.f32.gmra.mxu0 %v815
    %v834 = vpop.f32.mrf.mxu0
    %v835 = vadd.f32 %v811, %v834
    %836 = vdwg.mxu0
    %837 = vmatpush.msra.mxu0 0.0
    %838 = vmatpush.msra.mxu0 0.0
    %839 = vmatpush.msra.mxu0 0.0
    %840 = vmatpush.msra.mxu0 0.0
    %841 = vmatpush.msra.mxu0 0.0
    %842 = vmatpush.msra.mxu0 0.0
    %843 = vmatpush.msra.mxu0 0.0
    %844 = vmatpush.msra.mxu0 %v804
    %845 = vmatpush.msra.mxu0 %v800
    %846 = vmatpush.msra.mxu0 %v796
    %847 = vmatpush.msra.mxu0 %v792
    %848 = vmatpush.msra.mxu0 %v788
    %849 = vmatpush.msra.mxu0 %v784
    %850 = vmatpush.msra.mxu0 %v780
    %851 = vmatpush.msra.mxu0 %v776
    %852 = vmatpush.msra.mxu0 %v772
    %853 = vmatmul.f32.gmra.mxu0 %v815
    %v854 = vpop.f32.mrf.mxu0
    %v855 = vadd.f32 %v811, %v854
    %856 = vdwg.mxu0
    %857 = vmatpush.msra.mxu0 0.0
    %858 = vmatpush.msra.mxu0 0.0
    %859 = vmatpush.msra.mxu0 0.0
    %860 = vmatpush.msra.mxu0 0.0
    %861 = vmatpush.msra.mxu0 0.0
    %862 = vmatpush.msra.mxu0 0.0
    %863 = vmatpush.msra.mxu0 0.0
    %864 = vmatpush.msra.mxu0 %v805
    %865 = vmatpush.msra.mxu0 %v801
    %866 = vmatpush.msra.mxu0 %v797
    %867 = vmatpush.msra.mxu0 %v793
    %868 = vmatpush.msra.mxu0 %v789
    %869 = vmatpush.msra.mxu0 %v785
    %870 = vmatpush.msra.mxu0 %v781
    %871 = vmatpush.msra.mxu0 %v777
    %872 = vmatpush.msra.mxu0 %v773
    %873 = vmatmul.f32.gmra.mxu0 %v815
    %v874 = vpop.f32.mrf.mxu0
    %v875 = vadd.f32 %v811, %v874
    %876 = vdwg.mxu0
    %877 = vmatpush.msra.mxu0 0.0
    %878 = vmatpush.msra.mxu0 0.0
    %879 = vmatpush.msra.mxu0 0.0
    %880 = vmatpush.msra.mxu0 0.0
    %881 = vmatpush.msra.mxu0 0.0
    %882 = vmatpush.msra.mxu0 0.0
    %883 = vmatpush.msra.mxu0 0.0
    %884 = vmatpush.msra.mxu0 %v806
    %885 = vmatpush.msra.mxu0 %v802
    %886 = vmatpush.msra.mxu0 %v798
    %887 = vmatpush.msra.mxu0 %v794
    %888 = vmatpush.msra.mxu0 %v790
    %889 = vmatpush.msra.mxu0 %v786
    %890 = vmatpush.msra.mxu0 %v782
    %891 = vmatpush.msra.mxu0 %v778
    %892 = vmatpush.msra.mxu0 %v774
    %893 = vmatmul.f32.gmra.mxu0 %v815
    %v894 = vpop.f32.mrf.mxu0
    %v895 = vadd.f32 %v811, %v894
    %896 = vdwg.mxu0
    %v899 = vrot.slane %v855, 4
    %v900 = vsel %vm510, %v835, %v899
    %902 = vst [vmem:[#allocation8] sm:$0xff] %v900
    %v905 = vrot.slane %v895, 4
    %v906 = vsel %vm510, %v875, %v905
    %s908 = scalar_lea.vmem [#allocation8], 8
    %909 = vst [vmem:[%s908] sm:$0xff] %v906
    // Predicated region
    $region26: #{tpu_custom_call.1} parent=1 // pred_check
      _
    $region27: #{tpu_custom_call.1} parent=1 // pred_check_branch
      %911 = sbr.rel (0) target = $region29
    $region28: #{tpu_custom_call.1} parent=1 // pred_region
      %913 = vsyncadd [#allocation7], 0
      %s914 = sshll.u32 [#allocation8], 4
      %s915 = int_to_ptr.vmem [resolvable:$true] %s914
      %s916 = sshll.u32 %s5, 4
      %s917 = int_to_ptr.hbm [resolvable:$true] %s916
      %922 = dma.vmem_to_hbm [thread:$0]  %s915, 256, %s917, [#allocation7], 128, 128, 8
    $region29: #{tpu_custom_call.1} parent=1 // pred_fallthru
      _
    // Predicated region
    $region30: #{tpu_custom_call.1} parent=1 // pred_check
      _
    $region31: #{tpu_custom_call.1} parent=1 // pred_check_branch
      %924 = sbr.rel (0) target = $region33
    $region32: #{tpu_custom_call.1} parent=1 // pred_region
      %926 = dma.done [#allocation7], 256
    $region33: #{tpu_custom_call.1} parent=1 // pred_fallthru
      _
    %927 = vsyncpa [#allocation6], 1
    %928 = vsyncpa [#allocation7], 1

</llo_original>
